<compile_context>
chip_gen: v7x
topology: tpu7x:2x2x1
jax: 0.10.0
libtpu: 0.0.40
codegen_flags: <defaults>
</compile_context>

<pallas_src>
import jax
import jax.numpy as jnp
from jax import lax
from jax.experimental import pallas as pl
from jax.experimental.pallas import tpu as pltpu


def _round_up(x, m):
    return ((x + m - 1) // m) * m


def _pick_seq_tile(S, cap=8):
    for t in range(min(S, cap), 0, -1):
        if S % t == 0:
            return t
    return 1


def decoder_kernel(emb_ref, h0_ref, wih_ref, whh_ref, b_ref, wfc_ref, bfc_ref,
                   logits_ref, hout_ref, hs_ref):
    # emb_ref:    [tS, Bp, Hp]  time-major embedded tokens (one time block)
    # h0_ref:     [Bp, Hp]      initial hidden state
    # wih_ref:    [Hp, Hp]      W_ih^T (padded)
    # whh_ref:    [Hp, Hp]      W_hh^T (padded)
    # b_ref:      [1, Hp]       b_ih + b_hh (padded)
    # wfc_ref:    [Hp, Op]      W_fc^T (padded)
    # bfc_ref:    [1, Op]       b_fc (padded)
    # logits_ref: [tS, Bp, Op]  output logits for this time block
    # hout_ref:   [Bp, Hp]      hidden carry / final hidden (same block each step)
    # hs_ref:     [tS, Bp, Hp]  block-local buffer (input proj, then hidden states)
    tS, Bp, Hp = emb_ref.shape
    Op = logits_ref.shape[-1]

    @pl.when(pl.program_id(0) == 0)
    def _():
        hout_ref[...] = h0_ref[...]

    # Hoisted input projection for the whole time block: one big MXU matmul,
    # bias added once (not per recurrence step).
    x_flat = emb_ref[...].reshape(tS * Bp, Hp)
    xproj = (jnp.dot(x_flat, wih_ref[...], preferred_element_type=jnp.float32)
             + b_ref[...])
    hs_ref[...] = xproj.reshape(tS, Bp, Hp)

    # Serial recurrence: only h @ W_hh is on the critical path; h stays in
    # vregs via the fori_loop carry (no per-step VMEM round trip for h).
    def step(t, h):
        h_new = jnp.tanh(
            jnp.dot(h, whh_ref[...], preferred_element_type=jnp.float32)
            + hs_ref[t])
        hs_ref[t] = h_new          # off the critical path; needed for the FC
        return h_new

    h = lax.fori_loop(0, tS, step, hout_ref[...], unroll=True)
    hout_ref[...] = h              # carried to the next grid step in VMEM

    # Final Linear over all tS timesteps of this block at once.
    flat = hs_ref[...].reshape(tS * Bp, Hp)
    out = (jnp.dot(flat, wfc_ref[...], preferred_element_type=jnp.float32)
           + bfc_ref[...])
    logits_ref[...] = out.reshape(tS, Bp, Op)


def decoder_forward(inputs, hidden, params, *, seq_tile=None):
    """inputs: int32 [B, S]; hidden: float32 [1, B, H].

    Returns (logits [B, S, O], hidden [1, B, H]) — same as the PyTorch module.
    """
    emb_table = params["embedding"]          # [O, H]
    w_ih = params["w_ih"]                    # [H, H] (PyTorch layout)
    w_hh = params["w_hh"]                    # [H, H]
    b_ih = params["b_ih"]                    # [H]
    b_hh = params["b_hh"]                    # [H]
    w_fc = params["w_fc"]                    # [O, H]
    b_fc = params["b_fc"]                    # [O]

    B, S = inputs.shape
    H = emb_table.shape[1]
    O = emb_table.shape[0]

    # Lane/sublane-friendly padded sizes.
    Bp = _round_up(B, 8)
    Hp = _round_up(H, 128)
    Op = _round_up(O, 128)

    tS = seq_tile if seq_tile is not None else _pick_seq_tile(S)
    assert S % tS == 0, "seq_tile must divide the sequence length"

    f32 = jnp.float32

    # Glue: embedding lookup, gathered directly time-major -> [S, B, H].
    # TODO(synk): the data-dependent gather stays in XLA; a scalar-prefetch
    # pl.Element gather is only worthwhile for very large vocab/hidden sizes.
    emb_tm = jnp.take(emb_table, inputs.T, axis=0)
    emb_p = jnp.zeros((S, Bp, Hp), f32).at[:, :B, :H].set(emb_tm.astype(f32))

    h0_p = jnp.zeros((Bp, Hp), f32).at[:B, :H].set(hidden[0].astype(f32))
    wih_p = jnp.zeros((Hp, Hp), f32).at[:H, :H].set(w_ih.T.astype(f32))
    whh_p = jnp.zeros((Hp, Hp), f32).at[:H, :H].set(w_hh.T.astype(f32))
    b_p = jnp.zeros((1, Hp), f32).at[0, :H].set((b_ih + b_hh).astype(f32))
    wfc_p = jnp.zeros((Hp, Op), f32).at[:H, :O].set(w_fc.T.astype(f32))
    bfc_p = jnp.zeros((1, Op), f32).at[0, :O].set(b_fc.astype(f32))

    grid = (S // tS,)

    logits_p, hout_p = pl.pallas_call(
        decoder_kernel,
        out_shape=(
            jax.ShapeDtypeStruct((S, Bp, Op), f32),
            jax.ShapeDtypeStruct((Bp, Hp), f32),
        ),
        grid=grid,
        in_specs=[
            pl.BlockSpec((tS, Bp, Hp), lambda s: (s, 0, 0)),   # emb (time block)
            pl.BlockSpec((Bp, Hp), lambda s: (0, 0)),          # h0
            pl.BlockSpec((Hp, Hp), lambda s: (0, 0)),          # W_ih^T
            pl.BlockSpec((Hp, Hp), lambda s: (0, 0)),          # W_hh^T
            pl.BlockSpec((1, Hp), lambda s: (0, 0)),           # b_ih + b_hh
            pl.BlockSpec((Hp, Op), lambda s: (0, 0)),          # W_fc^T
            pl.BlockSpec((1, Op), lambda s: (0, 0)),           # b_fc
        ],
        out_specs=(
            pl.BlockSpec((tS, Bp, Op), lambda s: (s, 0, 0)),   # logits block
            pl.BlockSpec((Bp, Hp), lambda s: (0, 0)),          # hidden carry/out
        ),
        scratch_shapes=[
            pltpu.VMEM((tS, Bp, Hp), f32),   # block-local proj / hidden states
        ],
        compiler_params=pltpu.CompilerParams(
            dimension_semantics=("arbitrary",),   # sequential recurrence over S
            vmem_limit_bytes=32 * 1024 * 1024,    # portable across v5e/v6e/v7x
        ),
    )(emb_p, h0_p, wih_p, whh_p, b_p, wfc_p, bfc_p)

    # Strip padding; return batch-first like nn.RNN(batch_first=True).
    logits = jnp.transpose(logits_p[:, :B, :O], (1, 0, 2))    # [B, S, O]
    h_out = hout_p[:B, :H][None, :, :]                        # [1, B, H]
    return logits, h_out


def init_params(key, hidden_size, output_size):
    ks = jax.random.split(key, 7)
    scale = 0.1
    return {
        "embedding": scale * jax.random.normal(ks[0], (output_size, hidden_size), jnp.float32),
        "w_ih": scale * jax.random.normal(ks[1], (hidden_size, hidden_size), jnp.float32),
        "w_hh": scale * jax.random.normal(ks[2], (hidden_size, hidden_size), jnp.float32),
        "b_ih": scale * jax.random.normal(ks[3], (hidden_size,), jnp.float32),
        "b_hh": scale * jax.random.normal(ks[4], (hidden_size,), jnp.float32),
        "w_fc": scale * jax.random.normal(ks[5], (output_size, hidden_size), jnp.float32),
        "b_fc": scale * jax.random.normal(ks[6], (output_size,), jnp.float32),
    }


def reference_forward(inputs, hidden, params):
    """Pure-JAX reference matching nn.Embedding + nn.RNN(tanh) + nn.Linear."""
    emb = jnp.take(params["embedding"], inputs, axis=0)       # [B, S, H]
    h = hidden[0]                                             # [B, H]
    outs = []
    for t in range(inputs.shape[1]):
        x_t = emb[:, t, :]
        h = jnp.tanh(x_t @ params["w_ih"].T + params["b_ih"]
                     + h @ params["w_hh"].T + params["b_hh"])
        outs.append(h)
    rnn_out = jnp.stack(outs, axis=1)                          # [B, S, H]
    logits = rnn_out @ params["w_fc"].T + params["b_fc"]       # [B, S, O]
    return logits, h[None, :, :]


if __name__ == "__main__":
    batch, seq, hidden_size, output_size = 2, 8, 32, 16

    key = jax.random.PRNGKey(0)
    k_inp, k_h, k_par = jax.random.split(key, 3)

    inputs = jax.random.randint(k_inp, (batch, seq), 0, output_size, dtype=jnp.int32)
    hidden = jax.random.normal(k_h, (1, batch, hidden_size), jnp.float32)
    params = init_params(k_par, hidden_size, output_size)

    # seq_tile=4 -> grid=(2,) so the cross-block hidden-carry path is exercised.
    logits, h_out = decoder_forward(inputs, hidden, params, seq_tile=4)
    logits = jax.block_until_ready(logits)
    h_out = jax.block_until_ready(h_out)

    ref_logits, ref_h = reference_forward(inputs, hidden, params)
    assert logits.shape == (batch, seq, output_size)
    assert h_out.shape == (1, batch, hidden_size)
    assert jnp.allclose(logits, ref_logits, atol=1e-5, rtol=1e-5)
    assert jnp.allclose(h_out, ref_h, atol=1e-5, rtol=1e-5)

    print("KERNEL_OK")
</pallas_src>

<mosaic_0001>
module attributes {stable_mosaic.version = 11 : i64} {
  func.func @decoder_kernel(%arg0: i32, %arg1: memref<4x8x128xf32, #tpu.memory_space<vmem>>, %arg2: memref<8x128xf32, #tpu.memory_space<vmem>>, %arg3: memref<128x128xf32, #tpu.memory_space<vmem>>, %arg4: memref<128x128xf32, #tpu.memory_space<vmem>>, %arg5: memref<1x128xf32, #tpu.memory_space<vmem>>, %arg6: memref<128x128xf32, #tpu.memory_space<vmem>>, %arg7: memref<1x128xf32, #tpu.memory_space<vmem>>, %arg8: memref<4x8x128xf32, #tpu.memory_space<vmem>>, %arg9: memref<8x128xf32, #tpu.memory_space<vmem>>, %arg10: memref<4x8x128xf32, #tpu.memory_space<vmem>>) attributes {dimension_semantics = [#tpu.dimension_semantics<arbitrary>], iteration_bounds = array<i64: 2>, scalar_prefetch = 0 : i64, scratch_operands = 1 : i64, tpu.core_type = #tpu.core_type<tc>, window_params = [{transform_indices = @transform_0, window_bounds = array<i64: 4, 8, 128>}, {pipeline_mode = #tpu.pipeline_mode<synchronous>, transform_indices = @transform_1, window_bounds = array<i64: 8, 128>}, {pipeline_mode = #tpu.pipeline_mode<synchronous>, transform_indices = @transform_2, window_bounds = array<i64: 128, 128>}, {pipeline_mode = #tpu.pipeline_mode<synchronous>, transform_indices = @transform_3, window_bounds = array<i64: 128, 128>}, {pipeline_mode = #tpu.pipeline_mode<synchronous>, transform_indices = @transform_4, window_bounds = array<i64: 1, 128>}, {pipeline_mode = #tpu.pipeline_mode<synchronous>, transform_indices = @transform_5, window_bounds = array<i64: 128, 128>}, {pipeline_mode = #tpu.pipeline_mode<synchronous>, transform_indices = @transform_6, window_bounds = array<i64: 1, 128>}, {transform_indices = @transform_7, window_bounds = array<i64: 4, 8, 128>}, {pipeline_mode = #tpu.pipeline_mode<synchronous>, transform_indices = @transform_8, window_bounds = array<i64: 8, 128>}]} {
    %c0_i32 = arith.constant 0 : i32
    %0 = arith.cmpi eq, %arg0, %c0_i32 : i32
    %1 = arith.extui %0 : i1 to i32
    %c0_i32_0 = arith.constant 0 : i32
    %2 = arith.cmpi ne, %1, %c0_i32_0 : i32
    scf.if %2 {
      %c0_54 = arith.constant 0 : index
      %c0_55 = arith.constant 0 : index
      %67 = vector.load %arg2[%c0_54, %c0_55] : memref<8x128xf32, #tpu.memory_space<vmem>>, vector<8x128xf32>
      %c0_56 = arith.constant 0 : index
      %c0_57 = arith.constant 0 : index
      %68 = vector.load %arg9[%c0_56, %c0_57] : memref<8x128xf32, #tpu.memory_space<vmem>>, vector<8x128xf32>
      tpu.vector_store %arg9[%c0_56, %c0_57], %67 {strides = array<i32>} : memref<8x128xf32, #tpu.memory_space<vmem>>, vector<8x128xf32>,
    } else {
    }
    %c0 = arith.constant 0 : index
    %c0_1 = arith.constant 0 : index
    %c0_2 = arith.constant 0 : index
    %3 = vector.load %arg1[%c0, %c0_1, %c0_2] : memref<4x8x128xf32, #tpu.memory_space<vmem>>, vector<4x8x128xf32>
    %4 = vector.shape_cast %3 : vector<4x8x128xf32> to vector<32x128xf32>
    %c0_3 = arith.constant 0 : index
    %c0_4 = arith.constant 0 : index
    %5 = vector.load %arg3[%c0_3, %c0_4] : memref<128x128xf32, #tpu.memory_space<vmem>>, vector<128x128xf32>
    %cst = arith.constant dense<0.000000e+00> : vector<32x128xf32>
    %6 = tpu.matmul %4, %5, %cst {dimension_numbers = #tpu.dot_dimension_numbers<[1], [0], [0], [1], [0, 0, 1, 1], [], []>} : vector<32x128xf32>, vector<128x128xf32>, vector<32x128xf32> -> vector<32x128xf32>
    %c0_5 = arith.constant 0 : index
    %c0_6 = arith.constant 0 : index
    %7 = vector.load %arg5[%c0_5, %c0_6] : memref<1x128xf32, #tpu.memory_space<vmem>>, vector<1x128xf32>
    %8 = vector.broadcast %7 : vector<1x128xf32> to vector<32x128xf32>
    %9 = arith.addf %6, %8 : vector<32x128xf32>
    %10 = vector.shape_cast %9 : vector<32x128xf32> to vector<4x8x128xf32>
    %c0_7 = arith.constant 0 : index
    %c0_8 = arith.constant 0 : index
    %c0_9 = arith.constant 0 : index
    %11 = vector.load %arg10[%c0_7, %c0_8, %c0_9] : memref<4x8x128xf32, #tpu.memory_space<vmem>>, vector<4x8x128xf32>
    tpu.vector_store %arg10[%c0_7, %c0_8, %c0_9], %10 {strides = array<i32>} : memref<4x8x128xf32, #tpu.memory_space<vmem>>, vector<4x8x128xf32>,
    %c0_10 = arith.constant 0 : index
    %c0_11 = arith.constant 0 : index
    %12 = vector.load %arg9[%c0_10, %c0_11] : memref<8x128xf32, #tpu.memory_space<vmem>>, vector<8x128xf32>
    %c0_i32_12 = arith.constant 0 : i32
    %c0_13 = arith.constant 0 : index
    %c0_14 = arith.constant 0 : index
    %13 = vector.load %arg4[%c0_13, %c0_14] : memref<128x128xf32, #tpu.memory_space<vmem>>, vector<128x128xf32>
    %cst_15 = arith.constant dense<0.000000e+00> : vector<8x128xf32>
    %14 = tpu.matmul %12, %13, %cst_15 {dimension_numbers = #tpu.dot_dimension_numbers<[1], [0], [0], [1], [0, 0, 1, 1], [], []>} : vector<8x128xf32>, vector<128x128xf32>, vector<8x128xf32> -> vector<8x128xf32>
    %15 = arith.index_cast %c0_i32_12 : i32 to index
    %c0_16 = arith.constant 0 : index
    %c0_17 = arith.constant 0 : index
    %16 = vector.load %arg10[%15, %c0_16, %c0_17] : memref<4x8x128xf32, #tpu.memory_space<vmem>>, vector<1x8x128xf32>
    %17 = vector.shape_cast %16 : vector<1x8x128xf32> to vector<8x128xf32>
    %18 = arith.addf %14, %17 : vector<8x128xf32>
    %19 = math.tanh %18 : vector<8x128xf32>
    %20 = arith.index_cast %c0_i32_12 : i32 to index
    %c0_18 = arith.constant 0 : index
    %c0_19 = arith.constant 0 : index
    %21 = vector.load %arg10[%20, %c0_18, %c0_19] : memref<4x8x128xf32, #tpu.memory_space<vmem>>, vector<1x8x128xf32>
    %22 = vector.shape_cast %21 : vector<1x8x128xf32> to vector<8x128xf32>
    %23 = vector.shape_cast %19 : vector<8x128xf32> to vector<1x8x128xf32>
    tpu.vector_store %arg10[%20, %c0_18, %c0_19], %23 {strides = array<i32>} : memref<4x8x128xf32, #tpu.memory_space<vmem>>, vector<1x8x128xf32>,
    %c1_i32 = arith.constant 1 : i32
    %c0_20 = arith.constant 0 : index
    %c0_21 = arith.constant 0 : index
    %24 = vector.load %arg4[%c0_20, %c0_21] : memref<128x128xf32, #tpu.memory_space<vmem>>, vector<128x128xf32>
    %cst_22 = arith.constant dense<0.000000e+00> : vector<8x128xf32>
    %25 = tpu.matmul %19, %24, %cst_22 {dimension_numbers = #tpu.dot_dimension_numbers<[1], [0], [0], [1], [0, 0, 1, 1], [], []>} : vector<8x128xf32>, vector<128x128xf32>, vector<8x128xf32> -> vector<8x128xf32>
    %26 = arith.index_cast %c1_i32 : i32 to index
    %c0_23 = arith.constant 0 : index
    %c0_24 = arith.constant 0 : index
    %27 = vector.load %arg10[%26, %c0_23, %c0_24] : memref<4x8x128xf32, #tpu.memory_space<vmem>>, vector<1x8x128xf32>
    %28 = vector.shape_cast %27 : vector<1x8x128xf32> to vector<8x128xf32>
    %29 = arith.addf %25, %28 : vector<8x128xf32>
    %30 = math.tanh %29 : vector<8x128xf32>
    %31 = arith.index_cast %c1_i32 : i32 to index
    %c0_25 = arith.constant 0 : index
    %c0_26 = arith.constant 0 : index
    %32 = vector.load %arg10[%31, %c0_25, %c0_26] : memref<4x8x128xf32, #tpu.memory_space<vmem>>, vector<1x8x128xf32>
    %33 = vector.shape_cast %32 : vector<1x8x128xf32> to vector<8x128xf32>
    %34 = vector.shape_cast %30 : vector<8x128xf32> to vector<1x8x128xf32>
    tpu.vector_store %arg10[%31, %c0_25, %c0_26], %34 {strides = array<i32>} : memref<4x8x128xf32, #tpu.memory_space<vmem>>, vector<1x8x128xf32>,
    %c2_i32 = arith.constant 2 : i32
    %c0_27 = arith.constant 0 : index
    %c0_28 = arith.constant 0 : index
    %35 = vector.load %arg4[%c0_27, %c0_28] : memref<128x128xf32, #tpu.memory_space<vmem>>, vector<128x128xf32>
    %cst_29 = arith.constant dense<0.000000e+00> : vector<8x128xf32>
    %36 = tpu.matmul %30, %35, %cst_29 {dimension_numbers = #tpu.dot_dimension_numbers<[1], [0], [0], [1], [0, 0, 1, 1], [], []>} : vector<8x128xf32>, vector<128x128xf32>, vector<8x128xf32> -> vector<8x128xf32>
    %37 = arith.index_cast %c2_i32 : i32 to index
    %c0_30 = arith.constant 0 : index
    %c0_31 = arith.constant 0 : index
    %38 = vector.load %arg10[%37, %c0_30, %c0_31] : memref<4x8x128xf32, #tpu.memory_space<vmem>>, vector<1x8x128xf32>
    %39 = vector.shape_cast %38 : vector<1x8x128xf32> to vector<8x128xf32>
    %40 = arith.addf %36, %39 : vector<8x128xf32>
    %41 = math.tanh %40 : vector<8x128xf32>
    %42 = arith.index_cast %c2_i32 : i32 to index
    %c0_32 = arith.constant 0 : index
    %c0_33 = arith.constant 0 : index
    %43 = vector.load %arg10[%42, %c0_32, %c0_33] : memref<4x8x128xf32, #tpu.memory_space<vmem>>, vector<1x8x128xf32>
    %44 = vector.shape_cast %43 : vector<1x8x128xf32> to vector<8x128xf32>
    %45 = vector.shape_cast %41 : vector<8x128xf32> to vector<1x8x128xf32>
    tpu.vector_store %arg10[%42, %c0_32, %c0_33], %45 {strides = array<i32>} : memref<4x8x128xf32, #tpu.memory_space<vmem>>, vector<1x8x128xf32>,
    %c3_i32 = arith.constant 3 : i32
    %c0_34 = arith.constant 0 : index
    %c0_35 = arith.constant 0 : index
    %46 = vector.load %arg4[%c0_34, %c0_35] : memref<128x128xf32, #tpu.memory_space<vmem>>, vector<128x128xf32>
    %cst_36 = arith.constant dense<0.000000e+00> : vector<8x128xf32>
    %47 = tpu.matmul %41, %46, %cst_36 {dimension_numbers = #tpu.dot_dimension_numbers<[1], [0], [0], [1], [0, 0, 1, 1], [], []>} : vector<8x128xf32>, vector<128x128xf32>, vector<8x128xf32> -> vector<8x128xf32>
    %48 = arith.index_cast %c3_i32 : i32 to index
    %c0_37 = arith.constant 0 : index
    %c0_38 = arith.constant 0 : index
    %49 = vector.load %arg10[%48, %c0_37, %c0_38] : memref<4x8x128xf32, #tpu.memory_space<vmem>>, vector<1x8x128xf32>
    %50 = vector.shape_cast %49 : vector<1x8x128xf32> to vector<8x128xf32>
    %51 = arith.addf %47, %50 : vector<8x128xf32>
    %52 = math.tanh %51 : vector<8x128xf32>
    %53 = arith.index_cast %c3_i32 : i32 to index
    %c0_39 = arith.constant 0 : index
    %c0_40 = arith.constant 0 : index
    %54 = vector.load %arg10[%53, %c0_39, %c0_40] : memref<4x8x128xf32, #tpu.memory_space<vmem>>, vector<1x8x128xf32>
    %55 = vector.shape_cast %54 : vector<1x8x128xf32> to vector<8x128xf32>
    %56 = vector.shape_cast %52 : vector<8x128xf32> to vector<1x8x128xf32>
    tpu.vector_store %arg10[%53, %c0_39, %c0_40], %56 {strides = array<i32>} : memref<4x8x128xf32, #tpu.memory_space<vmem>>, vector<1x8x128xf32>,
    %c4_i32 = arith.constant 4 : i32
    %c0_41 = arith.constant 0 : index
    %c0_42 = arith.constant 0 : index
    %57 = vector.load %arg9[%c0_41, %c0_42] : memref<8x128xf32, #tpu.memory_space<vmem>>, vector<8x128xf32>
    tpu.vector_store %arg9[%c0_41, %c0_42], %52 {strides = array<i32>} : memref<8x128xf32, #tpu.memory_space<vmem>>, vector<8x128xf32>,
    %c0_43 = arith.constant 0 : index
    %c0_44 = arith.constant 0 : index
    %c0_45 = arith.constant 0 : index
    %58 = vector.load %arg10[%c0_43, %c0_44, %c0_45] : memref<4x8x128xf32, #tpu.memory_space<vmem>>, vector<4x8x128xf32>
    %59 = vector.shape_cast %58 : vector<4x8x128xf32> to vector<32x128xf32>
    %c0_46 = arith.constant 0 : index
    %c0_47 = arith.constant 0 : index
    %60 = vector.load %arg6[%c0_46, %c0_47] : memref<128x128xf32, #tpu.memory_space<vmem>>, vector<128x128xf32>
    %cst_48 = arith.constant dense<0.000000e+00> : vector<32x128xf32>
    %61 = tpu.matmul %59, %60, %cst_48 {dimension_numbers = #tpu.dot_dimension_numbers<[1], [0], [0], [1], [0, 0, 1, 1], [], []>} : vector<32x128xf32>, vector<128x128xf32>, vector<32x128xf32> -> vector<32x128xf32>
    %c0_49 = arith.constant 0 : index
    %c0_50 = arith.constant 0 : index
    %62 = vector.load %arg7[%c0_49, %c0_50] : memref<1x128xf32, #tpu.memory_space<vmem>>, vector<1x128xf32>
    %63 = vector.broadcast %62 : vector<1x128xf32> to vector<32x128xf32>
    %64 = arith.addf %61, %63 : vector<32x128xf32>
    %65 = vector.shape_cast %64 : vector<32x128xf32> to vector<4x8x128xf32>
    %c0_51 = arith.constant 0 : index
    %c0_52 = arith.constant 0 : index
    %c0_53 = arith.constant 0 : index
    %66 = vector.load %arg8[%c0_51, %c0_52, %c0_53] : memref<4x8x128xf32, #tpu.memory_space<vmem>>, vector<4x8x128xf32>
    tpu.vector_store %arg8[%c0_51, %c0_52, %c0_53], %65 {strides = array<i32>} : memref<4x8x128xf32, #tpu.memory_space<vmem>>, vector<4x8x128xf32>,
    return
  }
  func.func @transform_0(%arg0: i32) -> (i32, i32, i32) {
    %c0_i32 = arith.constant 0 : i32
    %c0_i32_0 = arith.constant 0 : i32
    %c0_i32_1 = arith.constant 0 : i32
    return %arg0, %c0_i32, %c0_i32_0 : i32, i32, i32
  }
  func.func @transform_1(%arg0: i32) -> (i32, i32) {
    %c0_i32 = arith.constant 0 : i32
    %c0_i32_0 = arith.constant 0 : i32
    %c0_i32_1 = arith.constant 0 : i32
    return %c0_i32, %c0_i32_0 : i32, i32
  }
  func.func @transform_2(%arg0: i32) -> (i32, i32) {
    %c0_i32 = arith.constant 0 : i32
    %c0_i32_0 = arith.constant 0 : i32
    %c0_i32_1 = arith.constant 0 : i32
    return %c0_i32, %c0_i32_0 : i32, i32
  }
  func.func @transform_3(%arg0: i32) -> (i32, i32) {
    %c0_i32 = arith.constant 0 : i32
    %c0_i32_0 = arith.constant 0 : i32
    %c0_i32_1 = arith.constant 0 : i32
    return %c0_i32, %c0_i32_0 : i32, i32
  }
  func.func @transform_4(%arg0: i32) -> (i32, i32) {
    %c0_i32 = arith.constant 0 : i32
    %c0_i32_0 = arith.constant 0 : i32
    %c0_i32_1 = arith.constant 0 : i32
    return %c0_i32, %c0_i32_0 : i32, i32
  }
  func.func @transform_5(%arg0: i32) -> (i32, i32) {
    %c0_i32 = arith.constant 0 : i32
    %c0_i32_0 = arith.constant 0 : i32
    %c0_i32_1 = arith.constant 0 : i32
    return %c0_i32, %c0_i32_0 : i32, i32
  }
  func.func @transform_6(%arg0: i32) -> (i32, i32) {
    %c0_i32 = arith.constant 0 : i32
    %c0_i32_0 = arith.constant 0 : i32
    %c0_i32_1 = arith.constant 0 : i32
    return %c0_i32, %c0_i32_0 : i32, i32
  }
  func.func @transform_7(%arg0: i32) -> (i32, i32, i32) {
    %c0_i32 = arith.constant 0 : i32
    %c0_i32_0 = arith.constant 0 : i32
    %c0_i32_1 = arith.constant 0 : i32
    return %arg0, %c0_i32, %c0_i32_0 : i32, i32, i32
  }
  func.func @transform_8(%arg0: i32) -> (i32, i32) {
    %c0_i32 = arith.constant 0 : i32
    %c0_i32_0 = arith.constant 0 : i32
    %c0_i32_1 = arith.constant 0 : i32
    return %c0_i32, %c0_i32_0 : i32, i32
  }
}

</mosaic_0001>

<llo_original>
// kernel: tpu_custom_call.1
$region0: #{tpu_custom_call.1}
  #allocation0 [shape = 'u32[]', space=smem, size = 0x4, offset = 0x4, fixed_abs, tag = 'smem constant byte address 0x4 - core index']
  #allocation1 [shape = 'u32[144,128]{1,0:T(1,128)}', space=vmem, size = 0x12000, scoped, tag = 'internal scratch']
  #allocation2 [shape = 'f32[4,8,128]{2,1,0:T(8,128)}', space=vmem, size = 0x4000, scoped, tag = 'scratch operand']
  %s0 = inlined_call_operand.hbm [shape: f32[8,8,128], index: 0, kind: input, shape index: {}]
  %s1 = inlined_call_operand.hbm [shape: f32[8,128], index: 1, kind: input, shape index: {}]
  %s2 = inlined_call_operand.hbm [shape: f32[128,128], index: 2, kind: input, shape index: {}]
  %s3 = inlined_call_operand.hbm [shape: f32[128,128], index: 3, kind: input, shape index: {}]
  %s4 = inlined_call_operand.vmem [shape: f32[1,128], index: 4, kind: input, shape index: {}]
  %s5 = inlined_call_operand.hbm [shape: f32[128,128], index: 5, kind: input, shape index: {}]
  %s6 = inlined_call_operand.vmem [shape: f32[1,128], index: 6, kind: input, shape index: {}]
  %s7 = inlined_call_operand.hbm [shape: f32[8,8,128], index: 7, kind: output, shape index: {0}]
  %s8 = inlined_call_operand.hbm [shape: f32[8,128], index: 8, kind: output, shape index: {1}]
  %9 = xla_tuple %s7, %s8
  %s10 = sld [smem:[#allocation0]]
  $region93: #{tpu_custom_call.1} parent=0
    _
  %s12 = ssub.s32 1, %s10
  %s13 = scalar_select 0, %s12, %s10
  $region1: #{tpu_custom_call.1} parent=0
    #allocation3 [shape = 'u8[32768]{0}', space=vmem, size = 0x8000, scoped, tag = 'input window, operand 0']
    #allocation4 [shape = 's32[2]{0}', space=sflag, size = 0x8, scoped, tag = 'scoped memory for tpu_custom_call.1']
    #allocation5 [shape = 's32[2]{0}', space=sflag, size = 0x8, scoped, tag = 'scoped memory for tpu_custom_call.1']
    #allocation6 [shape = 'u8[4096]{0}', space=vmem, size = 0x1000, scoped, tag = 'input window, operand 1, single buffered']
    #allocation7 [shape = 's32[1]{0}', space=sflag, size = 0x4, scoped, tag = 'scoped memory for tpu_custom_call.1']
    #allocation8 [shape = 'u8[65536]{0}', space=vmem, size = 0x10000, scoped, tag = 'input window, operand 2, single buffered']
    #allocation9 [shape = 'u8[65536]{0}', space=vmem, size = 0x10000, scoped, tag = 'input window, operand 3, single buffered']
    #allocation10 [shape = 's32[1]{0}', space=sflag, size = 0x4, scoped, tag = 'scoped memory for tpu_custom_call.1']
    #allocation11 [shape = 'u8[65536]{0}', space=vmem, size = 0x10000, scoped, tag = 'input window, operand 5, single buffered']
    #allocation12 [shape = 'u8[32768]{0}', space=vmem, size = 0x8000, scoped, tag = 'output window, operand 0']
    #allocation13 [shape = 'u8[4096]{0}', space=vmem, size = 0x1000, scoped, tag = 'output window, operand 1, single buffered']
    #allocation14 [shape = 's32[1]{0}', space=sflag, size = 0x4, scoped, tag = 'scoped memory for tpu_custom_call.1']
    %14 = vsyncpa [#allocation4], 0
    %s15 = scalar_lea.sflag [#allocation4], 1
    %16 = vsyncpa %s15, 0
    %17 = vsyncpa [#allocation7], 0
    %18 = vsyncpa [#allocation10], 0
    %19 = vsyncpa [#allocation5], 0
    %s20 = scalar_lea.sflag [#allocation5], 1
    %21 = vsyncpa %s20, 0
    %22 = vsyncpa [#allocation14], 0
    loop: start=0, step=1, limit=4
    $region2: #{tpu_custom_call.1} parent=1 // loop_pre_header
      _
    $region3: #{tpu_custom_call.1} parent=1 // loop_header
      %s24 = sphi 0, %s28
      %p25 = scmp.ge.s32.totalorder %s24, 4
      %s34 = sphi 0, %s36
      %s37 = sphi 0, %s34
      %s38 = sphi 0, %s37
      %s54 = sphi 0, %s38
      %s58 = sphi 0, %s58
      %s60 = sphi 0, %s58
      %s61 = sphi 0, %s60
      %s75 = sphi 0, %s61
      %s79 = sphi 0, %s79
      %s81 = sphi 0, %s79
      %s82 = sphi 0, %s81
      %s96 = sphi 0, %s82
      %s100 = sphi 0, %s100
      %s102 = sphi 0, %s100
      %s103 = sphi 0, %s102
      %s117 = sphi 0, %s103
      %s121 = sphi 0, %s121
      %s123 = sphi 0, %s121
      %s124 = sphi 0, %s123
      %s138 = sphi 0, %s124
      %s142 = sphi 0, %s142
      %s144 = sphi 0, %s142
      %s145 = sphi 0, %s144
      %s159 = sphi 0, %s145
      %s163 = sphi 0, %s163
      %s165 = sphi 0, %s163
      %s166 = sphi 0, %s165
      %s180 = sphi 0, %s166
      %s186 = sphi 0, %s188
      %s189 = sphi 0, %s186
      %s190 = sphi 0, %s189
      %s206 = sphi 0, %s190
      %s210 = sphi 0, %s210
      %s212 = sphi 0, %s210
      %s213 = sphi 0, %s212
      %s227 = sphi 0, %s213
    $region4: #{tpu_custom_call.1} parent=1 // loop_header_branch
      %27 = sbr.rel (%p25) target = $region8
    $region5: #{tpu_custom_call.1} parent=1 // loop_body
      %s29 = ssub.s32 %s24, 1
      %s30 = ssub.s32 %s24, 2
      %s31 = sadd.s32 %s24, 1
      %s32 = ssub.s32 %s24, %s31
      %p33 = scmp.eq.s32.totalorder %s32, 0
      %s35 = sadd.s32 %s34, 1
      %s36 = scalar_select %p33, %s34, %s35
      %p39 = pneg %p33
      %p40 = scmp.eq.s32.totalorder %s24, 1
      %p41 = por %p39, %p40
      %p42 = scmp.ne.s32.totalorder %s34, %s37
      %p43 = scmp.eq.s32.totalorder %s24, 0
      %p44 = por %p42, %p43
      %p45 = scmp.ne.s32.totalorder %s34, %s37
      %p46 = scmp.eq.s32.totalorder %s29, 1
      %p47 = por %p45, %p46
      %p48 = scmp.ne.s32.totalorder %s37, %s38
      %p49 = scmp.eq.s32.totalorder %s29, 0
      %p50 = por %p48, %p49
      %p51 = scmp.ne.s32.totalorder %s37, %s38
      %p52 = scmp.eq.s32.totalorder %s30, 1
      %p53 = por %p51, %p52
      %p55 = scmp.ne.s32.totalorder %s38, %s54
      %p56 = scmp.eq.s32.totalorder %s30, 0
      %p57 = por %p55, %p56
      %s59 = sadd.s32 %s58, 1
      %p62 = scmp.eq.s32.totalorder %s24, 1
      %p63 = scmp.ne.s32.totalorder %s58, %s60
      %p64 = scmp.eq.s32.totalorder %s24, 0
      %p65 = por %p63, %p64
      %p66 = scmp.ne.s32.totalorder %s58, %s60
      %p67 = scmp.eq.s32.totalorder %s29, 1
      %p68 = por %p66, %p67
      %p69 = scmp.ne.s32.totalorder %s60, %s61
      %p70 = scmp.eq.s32.totalorder %s29, 0
      %p71 = por %p69, %p70
      %p72 = scmp.ne.s32.totalorder %s60, %s61
      %p73 = scmp.eq.s32.totalorder %s30, 1
      %p74 = por %p72, %p73
      %p76 = scmp.ne.s32.totalorder %s61, %s75
      %p77 = scmp.eq.s32.totalorder %s30, 0
      %p78 = por %p76, %p77
      %s80 = sadd.s32 %s79, 1
      %p83 = scmp.eq.s32.totalorder %s24, 1
      %p84 = scmp.ne.s32.totalorder %s79, %s81
      %p85 = scmp.eq.s32.totalorder %s24, 0
      %p86 = por %p84, %p85
      %p87 = scmp.ne.s32.totalorder %s79, %s81
      %p88 = scmp.eq.s32.totalorder %s29, 1
      %p89 = por %p87, %p88
      %p90 = scmp.ne.s32.totalorder %s81, %s82
      %p91 = scmp.eq.s32.totalorder %s29, 0
      %p92 = por %p90, %p91
      %p93 = scmp.ne.s32.totalorder %s81, %s82
      %p94 = scmp.eq.s32.totalorder %s30, 1
      %p95 = por %p93, %p94
      %p97 = scmp.ne.s32.totalorder %s82, %s96
      %p98 = scmp.eq.s32.totalorder %s30, 0
      %p99 = por %p97, %p98
      %s101 = sadd.s32 %s100, 1
      %p104 = scmp.eq.s32.totalorder %s24, 1
      %p105 = scmp.ne.s32.totalorder %s100, %s102
      %p106 = scmp.eq.s32.totalorder %s24, 0
      %p107 = por %p105, %p106
      %p108 = scmp.ne.s32.totalorder %s100, %s102
      %p109 = scmp.eq.s32.totalorder %s29, 1
      %p110 = por %p108, %p109
      %p111 = scmp.ne.s32.totalorder %s102, %s103
      %p112 = scmp.eq.s32.totalorder %s29, 0
      %p113 = por %p111, %p112
      %p114 = scmp.ne.s32.totalorder %s102, %s103
      %p115 = scmp.eq.s32.totalorder %s30, 1
      %p116 = por %p114, %p115
      %p118 = scmp.ne.s32.totalorder %s103, %s117
      %p119 = scmp.eq.s32.totalorder %s30, 0
      %p120 = por %p118, %p119
      %s122 = sadd.s32 %s121, 1
      %p125 = scmp.eq.s32.totalorder %s24, 1
      %p126 = scmp.ne.s32.totalorder %s121, %s123
      %p127 = scmp.eq.s32.totalorder %s24, 0
      %p128 = por %p126, %p127
      %p129 = scmp.ne.s32.totalorder %s121, %s123
      %p130 = scmp.eq.s32.totalorder %s29, 1
      %p131 = por %p129, %p130
      %p132 = scmp.ne.s32.totalorder %s123, %s124
      %p133 = scmp.eq.s32.totalorder %s29, 0
      %p134 = por %p132, %p133
      %p135 = scmp.ne.s32.totalorder %s123, %s124
      %p136 = scmp.eq.s32.totalorder %s30, 1
      %p137 = por %p135, %p136
      %p139 = scmp.ne.s32.totalorder %s124, %s138
      %p140 = scmp.eq.s32.totalorder %s30, 0
      %p141 = por %p139, %p140
      %s143 = sadd.s32 %s142, 1
      %p146 = scmp.eq.s32.totalorder %s24, 1
      %p147 = scmp.ne.s32.totalorder %s142, %s144
      %p148 = scmp.eq.s32.totalorder %s24, 0
      %p149 = por %p147, %p148
      %p150 = scmp.ne.s32.totalorder %s142, %s144
      %p151 = scmp.eq.s32.totalorder %s29, 1
      %p152 = por %p150, %p151
      %p153 = scmp.ne.s32.totalorder %s144, %s145
      %p154 = scmp.eq.s32.totalorder %s29, 0
      %p155 = por %p153, %p154
      %p156 = scmp.ne.s32.totalorder %s144, %s145
      %p157 = scmp.eq.s32.totalorder %s30, 1
      %p158 = por %p156, %p157
      %p160 = scmp.ne.s32.totalorder %s145, %s159
      %p161 = scmp.eq.s32.totalorder %s30, 0
      %p162 = por %p160, %p161
      %s164 = sadd.s32 %s163, 1
      %p167 = scmp.eq.s32.totalorder %s24, 1
      %p168 = scmp.ne.s32.totalorder %s163, %s165
      %p169 = scmp.eq.s32.totalorder %s24, 0
      %p170 = por %p168, %p169
      %p171 = scmp.ne.s32.totalorder %s163, %s165
      %p172 = scmp.eq.s32.totalorder %s29, 1
      %p173 = por %p171, %p172
      %p174 = scmp.ne.s32.totalorder %s165, %s166
      %p175 = scmp.eq.s32.totalorder %s29, 0
      %p176 = por %p174, %p175
      %p177 = scmp.ne.s32.totalorder %s165, %s166
      %p178 = scmp.eq.s32.totalorder %s30, 1
      %p179 = por %p177, %p178
      %p181 = scmp.ne.s32.totalorder %s166, %s180
      %p182 = scmp.eq.s32.totalorder %s30, 0
      %p183 = por %p181, %p182
      %s184 = ssub.s32 %s24, %s31
      %p185 = scmp.eq.s32.totalorder %s184, 0
      %s187 = sadd.s32 %s186, 1
      %s188 = scalar_select %p185, %s186, %s187
      %p191 = pneg %p185
      %p192 = scmp.eq.s32.totalorder %s24, 1
      %p193 = por %p191, %p192
      %p194 = scmp.ne.s32.totalorder %s186, %s189
      %p195 = scmp.eq.s32.totalorder %s24, 0
      %p196 = por %p194, %p195
      %p197 = scmp.ne.s32.totalorder %s186, %s189
      %p198 = scmp.eq.s32.totalorder %s29, 1
      %p199 = por %p197, %p198
      %p200 = scmp.ne.s32.totalorder %s189, %s190
      %p201 = scmp.eq.s32.totalorder %s29, 0
      %p202 = por %p200, %p201
      %p203 = scmp.ne.s32.totalorder %s189, %s190
      %p204 = scmp.eq.s32.totalorder %s30, 1
      %p205 = por %p203, %p204
      %p207 = scmp.ne.s32.totalorder %s190, %s206
      %p208 = scmp.eq.s32.totalorder %s30, 0
      %p209 = por %p207, %p208
      %s211 = sadd.s32 %s210, 1
      %p214 = scmp.eq.s32.totalorder %s24, 1
      %p215 = scmp.ne.s32.totalorder %s210, %s212
      %p216 = scmp.eq.s32.totalorder %s24, 0
      %p217 = por %p215, %p216
      %p218 = scmp.ne.s32.totalorder %s210, %s212
      %p219 = scmp.eq.s32.totalorder %s29, 1
      %p220 = por %p218, %p219
      %p221 = scmp.ne.s32.totalorder %s212, %s213
      %p222 = scmp.eq.s32.totalorder %s29, 0
      %p223 = por %p221, %p222
      %p224 = scmp.ne.s32.totalorder %s212, %s213
      %p225 = scmp.eq.s32.totalorder %s30, 1
      %p226 = por %p224, %p225
      %p228 = scmp.ne.s32.totalorder %s213, %s227
      %p229 = scmp.eq.s32.totalorder %s30, 0
      %p230 = por %p228, %p229
      %p231 = scmp.le.s32.totalorder 1, %s24
      %p232 = scmp.lt.s32.totalorder %s24, 3
      %p233 = pnand %p231, %p232
      %p234 = pneg %p233
      // Predicated region
      $region9: #{tpu_custom_call.1} parent=5 // pred_check
        _
      $region10: #{tpu_custom_call.1} parent=5 // pred_check_branch
        %236 = sbr.rel (%p233) target = $region12
      $region11: #{tpu_custom_call.1} parent=5 // pred_region
        %s237 = ssub.s32 %s24, 1
        // Predicated region
        $region13: #{tpu_custom_call.1} parent=11 // pred_check
          %p238 = pneg %p71
        $region14: #{tpu_custom_call.1} parent=11 // pred_check_branch
          %240 = sbr.rel (%p238) target = $region16
        $region15: #{tpu_custom_call.1} parent=11 // pred_region
          %s242 = ssub.s32 128, 128
          %243 = vsyncadd [#allocation7], %s242
          %s245 = sshll.u32 [#allocation6], 4
          %s246 = int_to_ptr.vmem [resolvable:$true] %s245
          %248 = dma.hbm_to_vmem [thread:$0]  %s1, 128, %s246, [#allocation7]
        $region16: #{tpu_custom_call.1} parent=11 // pred_fallthru
          _
        // Predicated region
        $region17: #{tpu_custom_call.1} parent=11 // pred_check
          %p249 = pneg %p92
        $region18: #{tpu_custom_call.1} parent=11 // pred_check_branch
          %251 = sbr.rel (%p249) target = $region20
        $region19: #{tpu_custom_call.1} parent=11 // pred_region
          %s253 = ssub.s32 2048, 2048
          %254 = vsyncadd [#allocation7], %s253
          %s255 = sshll.u32 [#allocation8], 4
          %s256 = int_to_ptr.vmem [resolvable:$true] %s255
          %261 = dma.hbm_to_vmem [thread:$0]  %s2, 2048, %s256, [#allocation7], 128, 128, 8
        $region20: #{tpu_custom_call.1} parent=11 // pred_fallthru
          _
        // Predicated region
        $region21: #{tpu_custom_call.1} parent=11 // pred_check
          %p262 = pneg %p113
        $region22: #{tpu_custom_call.1} parent=11 // pred_check_branch
          %264 = sbr.rel (%p262) target = $region24
        $region23: #{tpu_custom_call.1} parent=11 // pred_region
          %s266 = ssub.s32 2048, 2048
          %267 = vsyncadd [#allocation10], %s266
          %s268 = sshll.u32 [#allocation9], 4
          %s269 = int_to_ptr.vmem [resolvable:$true] %s268
          %274 = dma.hbm_to_vmem [thread:$0]  %s3, 2048, %s269, [#allocation10], 128, 128, 8
        $region24: #{tpu_custom_call.1} parent=11 // pred_fallthru
          _
        // Predicated region
        $region25: #{tpu_custom_call.1} parent=11 // pred_check
          %p275 = pneg %p134
        $region26: #{tpu_custom_call.1} parent=11 // pred_check_branch
          %277 = sbr.rel (%p275) target = $region28
        $region27: #{tpu_custom_call.1} parent=11 // pred_region
          _
        $region28: #{tpu_custom_call.1} parent=11 // pred_fallthru
          _
        // Predicated region
        $region29: #{tpu_custom_call.1} parent=11 // pred_check
          %p278 = pneg %p155
        $region30: #{tpu_custom_call.1} parent=11 // pred_check_branch
          %280 = sbr.rel (%p278) target = $region32
        $region31: #{tpu_custom_call.1} parent=11 // pred_region
          %s282 = ssub.s32 2048, 2048
          %283 = vsyncadd [#allocation10], %s282
          %s284 = sshll.u32 [#allocation11], 4
          %s285 = int_to_ptr.vmem [resolvable:$true] %s284
          %290 = dma.hbm_to_vmem [thread:$0]  %s5, 2048, %s285, [#allocation10], 128, 128, 8
        $region32: #{tpu_custom_call.1} parent=11 // pred_fallthru
          _
        // Predicated region
        $region33: #{tpu_custom_call.1} parent=11 // pred_check
          %p291 = pneg %p176
        $region34: #{tpu_custom_call.1} parent=11 // pred_check_branch
          %293 = sbr.rel (%p291) target = $region36
        $region35: #{tpu_custom_call.1} parent=11 // pred_region
          _
        $region36: #{tpu_custom_call.1} parent=11 // pred_fallthru
          _
      $region12: #{tpu_custom_call.1} parent=5 // pred_fallthru
        _
      %p294 = scmp.lt.s32.totalorder %s24, 2
      // Predicated region
      $region37: #{tpu_custom_call.1} parent=5 // pred_check
        %p295 = pneg %p294
      $region38: #{tpu_custom_call.1} parent=5 // pred_check_branch
        %297 = sbr.rel (%p295) target = $region40
      $region39: #{tpu_custom_call.1} parent=5 // pred_region
        // Predicated region
        $region41: #{tpu_custom_call.1} parent=39 // pred_check
          %p298 = pneg %p44
        $region42: #{tpu_custom_call.1} parent=39 // pred_check_branch
          %300 = sbr.rel (%p298) target = $region44
        $region43: #{tpu_custom_call.1} parent=39 // pred_region
          %s301 = sand.u32 %s34, 1
          %s302 = scalar_lea.sflag [#allocation4], %s301
          %s303 = sand.u32 %s34, 1
          %s304 = smul.addr %s303, 32
          %s305 = scalar_lea.vmem [#allocation3], %s304
          %s306 = smul.u32 4, %s24
          %s308 = ssub.s32 512, 512
          %309 = vsyncadd %s302, %s308
          %s310 = smul.addr %s306, 128
          %s311 = scalar_lea.hbm %s0, %s310
          %s312 = sshll.u32 %s305, 4
          %s313 = int_to_ptr.vmem [resolvable:$true] %s312
          %318 = dma.hbm_to_vmem [thread:$0]  %s311, 512, %s313, %s302, 128, 128, 8
        $region44: #{tpu_custom_call.1} parent=39 // pred_fallthru
          _
      $region40: #{tpu_custom_call.1} parent=5 // pred_fallthru
        _
      %p319 = scmp.le.s32.totalorder 1, %s24
      %p320 = scmp.lt.s32.totalorder %s24, 3
      %p321 = pnand %p319, %p320
      %p322 = pneg %p321
      // Predicated region
      $region45: #{tpu_custom_call.1} parent=5 // pred_check
        _
      $region46: #{tpu_custom_call.1} parent=5 // pred_check_branch
        %324 = sbr.rel (%p321) target = $region48
      $region47: #{tpu_custom_call.1} parent=5 // pred_region
        %s325 = ssub.s32 %s24, 1
        %s326 = sand.u32 %s37, 1
        %s327 = scalar_lea.sflag [#allocation4], %s326
        %s328 = sand.u32 %s37, 1
        %s329 = smul.addr %s328, 32
        %s330 = scalar_lea.vmem [#allocation3], %s329
        // Predicated region
        $region49: #{tpu_custom_call.1} parent=47 // pred_check
          %p331 = pneg %p50
        $region50: #{tpu_custom_call.1} parent=47 // pred_check_branch
          %333 = sbr.rel (%p331) target = $region52
        $region51: #{tpu_custom_call.1} parent=47 // pred_region
          %334 = dma.done %s327, 512
        $region52: #{tpu_custom_call.1} parent=47 // pred_fallthru
          _
        // Predicated region
        $region53: #{tpu_custom_call.1} parent=47 // pred_check
          %p335 = pneg %p71
        $region54: #{tpu_custom_call.1} parent=47 // pred_check_branch
          %337 = sbr.rel (%p335) target = $region56
        $region55: #{tpu_custom_call.1} parent=47 // pred_region
          %338 = dma.done [#allocation7], 128
        $region56: #{tpu_custom_call.1} parent=47 // pred_fallthru
          _
        // Predicated region
        $region57: #{tpu_custom_call.1} parent=47 // pred_check
          %p339 = pneg %p92
        $region58: #{tpu_custom_call.1} parent=47 // pred_check_branch
          %341 = sbr.rel (%p339) target = $region60
        $region59: #{tpu_custom_call.1} parent=47 // pred_region
          %342 = dma.done [#allocation7], 2048
        $region60: #{tpu_custom_call.1} parent=47 // pred_fallthru
          _
        // Predicated region
        $region61: #{tpu_custom_call.1} parent=47 // pred_check
          %p343 = pneg %p113
        $region62: #{tpu_custom_call.1} parent=47 // pred_check_branch
          %345 = sbr.rel (%p343) target = $region64
        $region63: #{tpu_custom_call.1} parent=47 // pred_region
          %346 = dma.done [#allocation10], 2048
        $region64: #{tpu_custom_call.1} parent=47 // pred_fallthru
          _
        // Predicated region
        $region65: #{tpu_custom_call.1} parent=47 // pred_check
          %p347 = pneg %p155
        $region66: #{tpu_custom_call.1} parent=47 // pred_check_branch
          %349 = sbr.rel (%p347) target = $region68
        $region67: #{tpu_custom_call.1} parent=47 // pred_region
          %350 = dma.done [#allocation10], 2048
        $region68: #{tpu_custom_call.1} parent=47 // pred_fallthru
          _
        %s351 = sand.u32 %s37, 1
        %s352 = scalar_lea.sflag [#allocation4], %s351
        %s353 = sand.u32 %s37, 1
        %s354 = smul.addr %s353, 32
        %s355 = scalar_lea.vmem [#allocation3], %s354
        %p356 = pneg %p50
        %p357 = pneg %p47
        %p358 = pneg %p71
        %p359 = pneg %p68
        %p360 = pneg %p92
        %p361 = pneg %p89
        %p362 = pneg %p113
        %p363 = pneg %p110
        %p364 = pneg %p134
        %p365 = pneg %p131
        %p366 = pneg %p155
        %p367 = pneg %p152
        %p368 = pneg %p176
        %p369 = pneg %p173
        %p370 = pneg %p202
        %p371 = pneg %p199
        %s372 = sand.u32 %s189, 1
        %s373 = scalar_lea.sflag [#allocation5], %s372
        %s374 = sand.u32 %s189, 1
        %s375 = smul.addr %s374, 32
        %s376 = scalar_lea.vmem [#allocation12], %s375
        %p377 = pneg %p223
        %p378 = pneg %p220
        %s379 = smul.u32 4, %s29
        %s380 = smul.u32 4, %s29
        %p381 = scmp.eq.s32.totalorder %s29, 0
        // Predicated region
        $region69: #{tpu_custom_call.1} parent=47 // pred_check
          %p382 = pneg %p381
        $region70: #{tpu_custom_call.1} parent=47 // pred_check_branch
          %384 = sbr.rel (%p382) target = $region72
        $region71: #{tpu_custom_call.1} parent=47 // pred_region
          %v385 = vld [vmem:[#allocation6] sm:$0xff]
          %386 = vst [vmem:[#allocation13] sm:$0xff] %v385
        $region72: #{tpu_custom_call.1} parent=47 // pred_fallthru
          _
        %v387 = vld [vmem:[%s330] sm:$0xff]
        %v388 = vld [vmem:[%s330 + $0x8] sm:$0xff]
        %v389 = vld [vmem:[%s330 + $0x10] sm:$0xff]
        %v390 = vld [vmem:[%s330 + $0x18] sm:$0xff]
        %v391 = vld [vmem:[#allocation8] sm:$0xff]
        %v392 = vld [vmem:[#allocation8 + $0x8] sm:$0xff]
        %v393 = vld [vmem:[#allocation8 + $0x10] sm:$0xff]
        %v394 = vld [vmem:[#allocation8 + $0x18] sm:$0xff]
        %v395 = vld [vmem:[#allocation8 + $0x20] sm:$0xff]
        %v396 = vld [vmem:[#allocation8 + $0x28] sm:$0xff]
        %v397 = vld [vmem:[#allocation8 + $0x30] sm:$0xff]
        %v398 = vld [vmem:[#allocation8 + $0x38] sm:$0xff]
        %v399 = vld [vmem:[#allocation8 + $0x40] sm:$0xff]
        %v400 = vld [vmem:[#allocation8 + $0x48] sm:$0xff]
        %v401 = vld [vmem:[#allocation8 + $0x50] sm:$0xff]
        %v402 = vld [vmem:[#allocation8 + $0x58] sm:$0xff]
        %v403 = vld [vmem:[#allocation8 + $0x60] sm:$0xff]
        %v404 = vld [vmem:[#allocation8 + $0x68] sm:$0xff]
        %v405 = vld [vmem:[#allocation8 + $0x70] sm:$0xff]
        %v406 = vld [vmem:[#allocation8 + $0x78] sm:$0xff]
        %v407 = vld [vmem:[%s4] sm:$0x1]
        %v409 = vlaneseq
        %v410 = vshrl.u32 %v409, 7
        %v411 = vsub.s32 0, %v410
        %v412 = vrot.slane %v407, %v411
        %414 = vmatprep.subr.mxu0 0.0
        %415 = vmatpush1.msra.mxu0 %v391
        %416 = vmatprep.subr.mxu0 0.0
        %417 = vmatpush1.msra.mxu0 %v392
        %418 = vmatprep.subr.mxu0 0.0
        %419 = vmatpush1.msra.mxu0 %v393
        %420 = vmatprep.subr.mxu0 0.0
        %421 = vmatpush1.msra.mxu0 %v394
        %422 = vmatprep.subr.mxu0 0.0
        %423 = vmatpush1.msra.mxu0 %v395
        %424 = vmatprep.subr.mxu0 0.0
        %425 = vmatpush1.msra.mxu0 %v396
        %426 = vmatprep.subr.mxu0 0.0
        %427 = vmatpush1.msra.mxu0 %v397
        %428 = vmatprep.subr.mxu0 0.0
        %429 = vmatpush1.msra.mxu0 %v398
        %430 = vmatprep.subr.mxu0 0.0
        %431 = vmatpush1.msra.mxu0 %v399
        %432 = vmatprep.subr.mxu0 0.0
        %433 = vmatpush1.msra.mxu0 %v400
        %434 = vmatprep.subr.mxu0 0.0
        %435 = vmatpush1.msra.mxu0 %v401
        %436 = vmatprep.subr.mxu0 0.0
        %437 = vmatpush1.msra.mxu0 %v402
        %438 = vmatprep.subr.mxu0 0.0
        %439 = vmatpush1.msra.mxu0 %v403
        %440 = vmatprep.subr.mxu0 0.0
        %441 = vmatpush1.msra.mxu0 %v404
        %442 = vmatprep.subr.mxu0 0.0
        %443 = vmatpush1.msra.mxu0 %v405
        %444 = vmatprep.subr.mxu0 0.0
        %445 = vmatpush1.msra.mxu0 %v406
        %446 = vmatprep.subr.mxu0 0.0
        %447 = vmatpush1.msra.mxu0 0.0
        %448 = vmatprep.subr.mxu0 0.0
        %449 = vmatpush1.msra.mxu0 0.0
        %450 = vmatprep.subr.mxu0 0.0
        %451 = vmatpush1.msra.mxu0 0.0
        %452 = vmatprep.subr.mxu0 0.0
        %453 = vmatpush1.msra.mxu0 0.0
        %454 = vmatprep.subr.mxu0 0.0
        %455 = vmatpush1.msra.mxu0 0.0
        %456 = vmatprep.subr.mxu0 0.0
        %457 = vmatpush1.msra.mxu0 0.0
        %458 = vmatprep.subr.mxu0 0.0
        %459 = vmatpush1.msra.mxu0 0.0
        %460 = vmatprep.subr.mxu0 0.0
        %461 = vmatpush1.msra.mxu0 0.0
        %462 = vmatprep.subr.mxu0 0.0
        %463 = vmatpush1.msra.mxu0 0.0
        %464 = vmatprep.subr.mxu0 0.0
        %465 = vmatpush1.msra.mxu0 0.0
        %466 = vmatprep.subr.mxu0 0.0
        %467 = vmatpush1.msra.mxu0 0.0
        %468 = vmatprep.subr.mxu0 0.0
        %469 = vmatpush1.msra.mxu0 0.0
        %470 = vmatprep.subr.mxu0 0.0
        %471 = vmatpush1.msra.mxu0 0.0
        %472 = vmatprep.subr.mxu0 0.0
        %473 = vmatpush1.msra.mxu0 0.0
        %474 = vmatprep.subr.mxu0 0.0
        %475 = vmatpush1.msra.mxu0 0.0
        %476 = vmatprep.subr.mxu0 0.0
        %477 = vmatpush1.msra.mxu0 0.0
        %478 = vmatprep.mubr.f32.mxu0 0.0
        %479 = vmatmul.mubr.f32.gmra.mrb[0].mxu0 %v387
        %v480 = vpop.f32.mrb[0].mxu0
        %v481 = vadd.f32 %v412, %v480
        %v482 = vpop.f32.mrb[0].mxu0
        %483 = vmatprep.mubr.f32.mxu0 0.0
        %484 = vmatmul.mubr.f32.gmra.mrb[0].mxu0 %v388
        %v485 = vpop.f32.mrb[0].mxu0
        %v486 = vadd.f32 %v412, %v485
        %v487 = vpop.f32.mrb[0].mxu0
        %488 = vmatprep.mubr.f32.mxu0 0.0
        %489 = vmatmul.mubr.f32.gmra.mrb[0].mxu0 %v389
        %v490 = vpop.f32.mrb[0].mxu0
        %v491 = vadd.f32 %v412, %v490
        %v492 = vpop.f32.mrb[0].mxu0
        %493 = vmatprep.mubr.f32.mxu0 0.0
        %494 = vmatmul.mubr.f32.gmra.mrb[0].mxu0 %v390
        %v495 = vpop.f32.mrb[0].mxu0
        %v496 = vadd.f32 %v412, %v495
        %v497 = vpop.f32.mrb[0].mxu0
        %498 = vdwg.mxu0
        %499 = vst [vmem:[#allocation2] sm:$0xff] %v481
        %500 = vst [vmem:[#allocation2 + $0x8] sm:$0xff] %v486
        %501 = vst [vmem:[#allocation2 + $0x10] sm:$0xff] %v491
        %502 = vst [vmem:[#allocation2 + $0x18] sm:$0xff] %v496
        %v503 = vld [vmem:[#allocation13] sm:$0xff]
        %v504 = vld [vmem:[#allocation9] sm:$0xff]
        %v505 = vld [vmem:[#allocation9 + $0x8] sm:$0xff]
        %v506 = vld [vmem:[#allocation9 + $0x10] sm:$0xff]
        %v507 = vld [vmem:[#allocation9 + $0x18] sm:$0xff]
        %v508 = vld [vmem:[#allocation9 + $0x20] sm:$0xff]
        %v509 = vld [vmem:[#allocation9 + $0x28] sm:$0xff]
        %v510 = vld [vmem:[#allocation9 + $0x30] sm:$0xff]
        %v511 = vld [vmem:[#allocation9 + $0x38] sm:$0xff]
        %v512 = vld [vmem:[#allocation9 + $0x40] sm:$0xff]
        %v513 = vld [vmem:[#allocation9 + $0x48] sm:$0xff]
        %v514 = vld [vmem:[#allocation9 + $0x50] sm:$0xff]
        %v515 = vld [vmem:[#allocation9 + $0x58] sm:$0xff]
        %v516 = vld [vmem:[#allocation9 + $0x60] sm:$0xff]
        %v517 = vld [vmem:[#allocation9 + $0x68] sm:$0xff]
        %v518 = vld [vmem:[#allocation9 + $0x70] sm:$0xff]
        %v519 = vld [vmem:[#allocation9 + $0x78] sm:$0xff]
        %v520 = vld [vmem:[#allocation2] sm:$0xff]
        %521 = vmatprep.subr.mxu0 0.0
        %522 = vmatpush1.msra.mxu0 %v504
        %523 = vmatprep.subr.mxu0 0.0
        %524 = vmatpush1.msra.mxu0 %v505
        %525 = vmatprep.subr.mxu0 0.0
        %526 = vmatpush1.msra.mxu0 %v506
        %527 = vmatprep.subr.mxu0 0.0
        %528 = vmatpush1.msra.mxu0 %v507
        %529 = vmatprep.subr.mxu0 0.0
        %530 = vmatpush1.msra.mxu0 %v508
        %531 = vmatprep.subr.mxu0 0.0
        %532 = vmatpush1.msra.mxu0 %v509
        %533 = vmatprep.subr.mxu0 0.0
        %534 = vmatpush1.msra.mxu0 %v510
        %535 = vmatprep.subr.mxu0 0.0
        %536 = vmatpush1.msra.mxu0 %v511
        %537 = vmatprep.subr.mxu0 0.0
        %538 = vmatpush1.msra.mxu0 %v512
        %539 = vmatprep.subr.mxu0 0.0
        %540 = vmatpush1.msra.mxu0 %v513
        %541 = vmatprep.subr.mxu0 0.0
        %542 = vmatpush1.msra.mxu0 %v514
        %543 = vmatprep.subr.mxu0 0.0
        %544 = vmatpush1.msra.mxu0 %v515
        %545 = vmatprep.subr.mxu0 0.0
        %546 = vmatpush1.msra.mxu0 %v516
        %547 = vmatprep.subr.mxu0 0.0
        %548 = vmatpush1.msra.mxu0 %v517
        %549 = vmatprep.subr.mxu0 0.0
        %550 = vmatpush1.msra.mxu0 %v518
        %551 = vmatprep.subr.mxu0 0.0
        %552 = vmatpush1.msra.mxu0 %v519
        %553 = vmatprep.subr.mxu0 0.0
        %554 = vmatpush1.msra.mxu0 0.0
        %555 = vmatprep.subr.mxu0 0.0
        %556 = vmatpush1.msra.mxu0 0.0
        %557 = vmatprep.subr.mxu0 0.0
        %558 = vmatpush1.msra.mxu0 0.0
        %559 = vmatprep.subr.mxu0 0.0
        %560 = vmatpush1.msra.mxu0 0.0
        %561 = vmatprep.subr.mxu0 0.0
        %562 = vmatpush1.msra.mxu0 0.0
        %563 = vmatprep.subr.mxu0 0.0
        %564 = vmatpush1.msra.mxu0 0.0
        %565 = vmatprep.subr.mxu0 0.0
        %566 = vmatpush1.msra.mxu0 0.0
        %567 = vmatprep.subr.mxu0 0.0
        %568 = vmatpush1.msra.mxu0 0.0
        %569 = vmatprep.subr.mxu0 0.0
        %570 = vmatpush1.msra.mxu0 0.0
        %571 = vmatprep.subr.mxu0 0.0
        %572 = vmatpush1.msra.mxu0 0.0
        %573 = vmatprep.subr.mxu0 0.0
        %574 = vmatpush1.msra.mxu0 0.0
        %575 = vmatprep.subr.mxu0 0.0
        %576 = vmatpush1.msra.mxu0 0.0
        %577 = vmatprep.subr.mxu0 0.0
        %578 = vmatpush1.msra.mxu0 0.0
        %579 = vmatprep.subr.mxu0 0.0
        %580 = vmatpush1.msra.mxu0 0.0
        %581 = vmatprep.subr.mxu0 0.0
        %582 = vmatpush1.msra.mxu0 0.0
        %583 = vmatprep.subr.mxu0 0.0
        %584 = vmatpush1.msra.mxu0 0.0
        %585 = vmatprep.mubr.f32.mxu0 0.0
        %586 = vmatmul.mubr.f32.gmra.mrb[0].mxu0 %v503
        %v587 = vpop.f32.mrb[0].mxu0
        %v588 = vadd.f32 %v520, %v587
        %v589 = vpop.f32.mrb[0].mxu0
        %590 = vdwg.mxu0
        %v591 = vtanh.pop %v588
        %592 = vst [vmem:[#allocation2] sm:$0xff] %v591
        %v593 = vld [vmem:[#allocation9] sm:$0xff]
        %v594 = vld [vmem:[#allocation9 + $0x8] sm:$0xff]
        %v595 = vld [vmem:[#allocation9 + $0x10] sm:$0xff]
        %v596 = vld [vmem:[#allocation9 + $0x18] sm:$0xff]
        %v597 = vld [vmem:[#allocation9 + $0x20] sm:$0xff]
        %v598 = vld [vmem:[#allocation9 + $0x28] sm:$0xff]
        %v599 = vld [vmem:[#allocation9 + $0x30] sm:$0xff]
        %v600 = vld [vmem:[#allocation9 + $0x38] sm:$0xff]
        %v601 = vld [vmem:[#allocation9 + $0x40] sm:$0xff]
        %v602 = vld [vmem:[#allocation9 + $0x48] sm:$0xff]
        %v603 = vld [vmem:[#allocation9 + $0x50] sm:$0xff]
        %v604 = vld [vmem:[#allocation9 + $0x58] sm:$0xff]
        %v605 = vld [vmem:[#allocation9 + $0x60] sm:$0xff]
        %v606 = vld [vmem:[#allocation9 + $0x68] sm:$0xff]
        %v607 = vld [vmem:[#allocation9 + $0x70] sm:$0xff]
        %v608 = vld [vmem:[#allocation9 + $0x78] sm:$0xff]
        %s609 = scalar_lea.vmem [#allocation2], 8
        %v610 = vld [vmem:[%s609] sm:$0xff]
        %611 = vmatprep.subr.mxu0 0.0
        %612 = vmatpush1.msra.mxu0 %v593
        %613 = vmatprep.subr.mxu0 0.0
        %614 = vmatpush1.msra.mxu0 %v594
        %615 = vmatprep.subr.mxu0 0.0
        %616 = vmatpush1.msra.mxu0 %v595
        %617 = vmatprep.subr.mxu0 0.0
        %618 = vmatpush1.msra.mxu0 %v596
        %619 = vmatprep.subr.mxu0 0.0
        %620 = vmatpush1.msra.mxu0 %v597
        %621 = vmatprep.subr.mxu0 0.0
        %622 = vmatpush1.msra.mxu0 %v598
        %623 = vmatprep.subr.mxu0 0.0
        %624 = vmatpush1.msra.mxu0 %v599
        %625 = vmatprep.subr.mxu0 0.0
        %626 = vmatpush1.msra.mxu0 %v600
        %627 = vmatprep.subr.mxu0 0.0
        %628 = vmatpush1.msra.mxu0 %v601
        %629 = vmatprep.subr.mxu0 0.0
        %630 = vmatpush1.msra.mxu0 %v602
        %631 = vmatprep.subr.mxu0 0.0
        %632 = vmatpush1.msra.mxu0 %v603
        %633 = vmatprep.subr.mxu0 0.0
        %634 = vmatpush1.msra.mxu0 %v604
        %635 = vmatprep.subr.mxu0 0.0
        %636 = vmatpush1.msra.mxu0 %v605
        %637 = vmatprep.subr.mxu0 0.0
        %638 = vmatpush1.msra.mxu0 %v606
        %639 = vmatprep.subr.mxu0 0.0
        %640 = vmatpush1.msra.mxu0 %v607
        %641 = vmatprep.subr.mxu0 0.0
        %642 = vmatpush1.msra.mxu0 %v608
        %643 = vmatprep.subr.mxu0 0.0
        %644 = vmatpush1.msra.mxu0 0.0
        %645 = vmatprep.subr.mxu0 0.0
        %646 = vmatpush1.msra.mxu0 0.0
        %647 = vmatprep.subr.mxu0 0.0
        %648 = vmatpush1.msra.mxu0 0.0
        %649 = vmatprep.subr.mxu0 0.0
        %650 = vmatpush1.msra.mxu0 0.0
        %651 = vmatprep.subr.mxu0 0.0
        %652 = vmatpush1.msra.mxu0 0.0
        %653 = vmatprep.subr.mxu0 0.0
        %654 = vmatpush1.msra.mxu0 0.0
        %655 = vmatprep.subr.mxu0 0.0
        %656 = vmatpush1.msra.mxu0 0.0
        %657 = vmatprep.subr.mxu0 0.0
        %658 = vmatpush1.msra.mxu0 0.0
        %659 = vmatprep.subr.mxu0 0.0
        %660 = vmatpush1.msra.mxu0 0.0
        %661 = vmatprep.subr.mxu0 0.0
        %662 = vmatpush1.msra.mxu0 0.0
        %663 = vmatprep.subr.mxu0 0.0
        %664 = vmatpush1.msra.mxu0 0.0
        %665 = vmatprep.subr.mxu0 0.0
        %666 = vmatpush1.msra.mxu0 0.0
        %667 = vmatprep.subr.mxu0 0.0
        %668 = vmatpush1.msra.mxu0 0.0
        %669 = vmatprep.subr.mxu0 0.0
        %670 = vmatpush1.msra.mxu0 0.0
        %671 = vmatprep.subr.mxu0 0.0
        %672 = vmatpush1.msra.mxu0 0.0
        %673 = vmatprep.subr.mxu0 0.0
        %674 = vmatpush1.msra.mxu0 0.0
        %675 = vmatprep.mubr.f32.mxu0 0.0
        %676 = vmatmul.mubr.f32.gmra.mrb[0].mxu0 %v591
        %v677 = vpop.f32.mrb[0].mxu0
        %v678 = vadd.f32 %v610, %v677
        %v679 = vpop.f32.mrb[0].mxu0
        %680 = vdwg.mxu0
        %v681 = vtanh.pop %v678
        %682 = vst [vmem:[%s609] sm:$0xff] %v681
        %v683 = vld [vmem:[#allocation9] sm:$0xff]
        %v684 = vld [vmem:[#allocation9 + $0x8] sm:$0xff]
        %v685 = vld [vmem:[#allocation9 + $0x10] sm:$0xff]
        %v686 = vld [vmem:[#allocation9 + $0x18] sm:$0xff]
        %v687 = vld [vmem:[#allocation9 + $0x20] sm:$0xff]
        %v688 = vld [vmem:[#allocation9 + $0x28] sm:$0xff]
        %v689 = vld [vmem:[#allocation9 + $0x30] sm:$0xff]
        %v690 = vld [vmem:[#allocation9 + $0x38] sm:$0xff]
        %v691 = vld [vmem:[#allocation9 + $0x40] sm:$0xff]
        %v692 = vld [vmem:[#allocation9 + $0x48] sm:$0xff]
        %v693 = vld [vmem:[#allocation9 + $0x50] sm:$0xff]
        %v694 = vld [vmem:[#allocation9 + $0x58] sm:$0xff]
        %v695 = vld [vmem:[#allocation9 + $0x60] sm:$0xff]
        %v696 = vld [vmem:[#allocation9 + $0x68] sm:$0xff]
        %v697 = vld [vmem:[#allocation9 + $0x70] sm:$0xff]
        %v698 = vld [vmem:[#allocation9 + $0x78] sm:$0xff]
        %s699 = scalar_lea.vmem [#allocation2], 16
        %v700 = vld [vmem:[%s699] sm:$0xff]
        %701 = vmatprep.subr.mxu0 0.0
        %702 = vmatpush1.msra.mxu0 %v683
        %703 = vmatprep.subr.mxu0 0.0
        %704 = vmatpush1.msra.mxu0 %v684
        %705 = vmatprep.subr.mxu0 0.0
        %706 = vmatpush1.msra.mxu0 %v685
        %707 = vmatprep.subr.mxu0 0.0
        %708 = vmatpush1.msra.mxu0 %v686
        %709 = vmatprep.subr.mxu0 0.0
        %710 = vmatpush1.msra.mxu0 %v687
        %711 = vmatprep.subr.mxu0 0.0
        %712 = vmatpush1.msra.mxu0 %v688
        %713 = vmatprep.subr.mxu0 0.0
        %714 = vmatpush1.msra.mxu0 %v689
        %715 = vmatprep.subr.mxu0 0.0
        %716 = vmatpush1.msra.mxu0 %v690
        %717 = vmatprep.subr.mxu0 0.0
        %718 = vmatpush1.msra.mxu0 %v691
        %719 = vmatprep.subr.mxu0 0.0
        %720 = vmatpush1.msra.mxu0 %v692
        %721 = vmatprep.subr.mxu0 0.0
        %722 = vmatpush1.msra.mxu0 %v693
        %723 = vmatprep.subr.mxu0 0.0
        %724 = vmatpush1.msra.mxu0 %v694
        %725 = vmatprep.subr.mxu0 0.0
        %726 = vmatpush1.msra.mxu0 %v695
        %727 = vmatprep.subr.mxu0 0.0
        %728 = vmatpush1.msra.mxu0 %v696
        %729 = vmatprep.subr.mxu0 0.0
        %730 = vmatpush1.msra.mxu0 %v697
        %731 = vmatprep.subr.mxu0 0.0
        %732 = vmatpush1.msra.mxu0 %v698
        %733 = vmatprep.subr.mxu0 0.0
        %734 = vmatpush1.msra.mxu0 0.0
        %735 = vmatprep.subr.mxu0 0.0
        %736 = vmatpush1.msra.mxu0 0.0
        %737 = vmatprep.subr.mxu0 0.0
        %738 = vmatpush1.msra.mxu0 0.0
        %739 = vmatprep.subr.mxu0 0.0
        %740 = vmatpush1.msra.mxu0 0.0
        %741 = vmatprep.subr.mxu0 0.0
        %742 = vmatpush1.msra.mxu0 0.0
        %743 = vmatprep.subr.mxu0 0.0
        %744 = vmatpush1.msra.mxu0 0.0
        %745 = vmatprep.subr.mxu0 0.0
        %746 = vmatpush1.msra.mxu0 0.0
        %747 = vmatprep.subr.mxu0 0.0
        %748 = vmatpush1.msra.mxu0 0.0
        %749 = vmatprep.subr.mxu0 0.0
        %750 = vmatpush1.msra.mxu0 0.0
        %751 = vmatprep.subr.mxu0 0.0
        %752 = vmatpush1.msra.mxu0 0.0
        %753 = vmatprep.subr.mxu0 0.0
        %754 = vmatpush1.msra.mxu0 0.0
        %755 = vmatprep.subr.mxu0 0.0
        %756 = vmatpush1.msra.mxu0 0.0
        %757 = vmatprep.subr.mxu0 0.0
        %758 = vmatpush1.msra.mxu0 0.0
        %759 = vmatprep.subr.mxu0 0.0
        %760 = vmatpush1.msra.mxu0 0.0
        %761 = vmatprep.subr.mxu0 0.0
        %762 = vmatpush1.msra.mxu0 0.0
        %763 = vmatprep.subr.mxu0 0.0
        %764 = vmatpush1.msra.mxu0 0.0
        %765 = vmatprep.mubr.f32.mxu0 0.0
        %766 = vmatmul.mubr.f32.gmra.mrb[0].mxu0 %v681
        %v767 = vpop.f32.mrb[0].mxu0
        %v768 = vadd.f32 %v700, %v767
        %v769 = vpop.f32.mrb[0].mxu0
        %770 = vdwg.mxu0
        %v771 = vtanh.pop %v768
        %772 = vst [vmem:[%s699] sm:$0xff] %v771
        %v773 = vld [vmem:[#allocation9] sm:$0xff]
        %v774 = vld [vmem:[#allocation9 + $0x8] sm:$0xff]
        %v775 = vld [vmem:[#allocation9 + $0x10] sm:$0xff]
        %v776 = vld [vmem:[#allocation9 + $0x18] sm:$0xff]
        %v777 = vld [vmem:[#allocation9 + $0x20] sm:$0xff]
        %v778 = vld [vmem:[#allocation9 + $0x28] sm:$0xff]
        %v779 = vld [vmem:[#allocation9 + $0x30] sm:$0xff]
        %v780 = vld [vmem:[#allocation9 + $0x38] sm:$0xff]
        %v781 = vld [vmem:[#allocation9 + $0x40] sm:$0xff]
        %v782 = vld [vmem:[#allocation9 + $0x48] sm:$0xff]
        %v783 = vld [vmem:[#allocation9 + $0x50] sm:$0xff]
        %v784 = vld [vmem:[#allocation9 + $0x58] sm:$0xff]
        %v785 = vld [vmem:[#allocation9 + $0x60] sm:$0xff]
        %v786 = vld [vmem:[#allocation9 + $0x68] sm:$0xff]
        %v787 = vld [vmem:[#allocation9 + $0x70] sm:$0xff]
        %v788 = vld [vmem:[#allocation9 + $0x78] sm:$0xff]
        %s789 = scalar_lea.vmem [#allocation2], 24
        %v790 = vld [vmem:[%s789] sm:$0xff]
        %791 = vmatprep.subr.mxu0 0.0
        %792 = vmatpush1.msra.mxu0 %v773
        %793 = vmatprep.subr.mxu0 0.0
        %794 = vmatpush1.msra.mxu0 %v774
        %795 = vmatprep.subr.mxu0 0.0
        %796 = vmatpush1.msra.mxu0 %v775
        %797 = vmatprep.subr.mxu0 0.0
        %798 = vmatpush1.msra.mxu0 %v776
        %799 = vmatprep.subr.mxu0 0.0
        %800 = vmatpush1.msra.mxu0 %v777
        %801 = vmatprep.subr.mxu0 0.0
        %802 = vmatpush1.msra.mxu0 %v778
        %803 = vmatprep.subr.mxu0 0.0
        %804 = vmatpush1.msra.mxu0 %v779
        %805 = vmatprep.subr.mxu0 0.0
        %806 = vmatpush1.msra.mxu0 %v780
        %807 = vmatprep.subr.mxu0 0.0
        %808 = vmatpush1.msra.mxu0 %v781
        %809 = vmatprep.subr.mxu0 0.0
        %810 = vmatpush1.msra.mxu0 %v782
        %811 = vmatprep.subr.mxu0 0.0
        %812 = vmatpush1.msra.mxu0 %v783
        %813 = vmatprep.subr.mxu0 0.0
        %814 = vmatpush1.msra.mxu0 %v784
        %815 = vmatprep.subr.mxu0 0.0
        %816 = vmatpush1.msra.mxu0 %v785
        %817 = vmatprep.subr.mxu0 0.0
        %818 = vmatpush1.msra.mxu0 %v786
        %819 = vmatprep.subr.mxu0 0.0
        %820 = vmatpush1.msra.mxu0 %v787
        %821 = vmatprep.subr.mxu0 0.0
        %822 = vmatpush1.msra.mxu0 %v788
        %823 = vmatprep.subr.mxu0 0.0
        %824 = vmatpush1.msra.mxu0 0.0
        %825 = vmatprep.subr.mxu0 0.0
        %826 = vmatpush1.msra.mxu0 0.0
        %827 = vmatprep.subr.mxu0 0.0
        %828 = vmatpush1.msra.mxu0 0.0
        %829 = vmatprep.subr.mxu0 0.0
        %830 = vmatpush1.msra.mxu0 0.0
        %831 = vmatprep.subr.mxu0 0.0
        %832 = vmatpush1.msra.mxu0 0.0
        %833 = vmatprep.subr.mxu0 0.0
        %834 = vmatpush1.msra.mxu0 0.0
        %835 = vmatprep.subr.mxu0 0.0
        %836 = vmatpush1.msra.mxu0 0.0
        %837 = vmatprep.subr.mxu0 0.0
        %838 = vmatpush1.msra.mxu0 0.0
        %839 = vmatprep.subr.mxu0 0.0
        %840 = vmatpush1.msra.mxu0 0.0
        %841 = vmatprep.subr.mxu0 0.0
        %842 = vmatpush1.msra.mxu0 0.0
        %843 = vmatprep.subr.mxu0 0.0
        %844 = vmatpush1.msra.mxu0 0.0
        %845 = vmatprep.subr.mxu0 0.0
        %846 = vmatpush1.msra.mxu0 0.0
        %847 = vmatprep.subr.mxu0 0.0
        %848 = vmatpush1.msra.mxu0 0.0
        %849 = vmatprep.subr.mxu0 0.0
        %850 = vmatpush1.msra.mxu0 0.0
        %851 = vmatprep.subr.mxu0 0.0
        %852 = vmatpush1.msra.mxu0 0.0
        %853 = vmatprep.subr.mxu0 0.0
        %854 = vmatpush1.msra.mxu0 0.0
        %855 = vmatprep.mubr.f32.mxu0 0.0
        %856 = vmatmul.mubr.f32.gmra.mrb[0].mxu0 %v771
        %v857 = vpop.f32.mrb[0].mxu0
        %v858 = vadd.f32 %v790, %v857
        %v859 = vpop.f32.mrb[0].mxu0
        %860 = vdwg.mxu0
        %v861 = vtanh.pop %v858
        %862 = vst [vmem:[%s789] sm:$0xff] %v861
        %863 = vst [vmem:[#allocation13] sm:$0xff] %v861
        %v864 = vld [vmem:[#allocation2] sm:$0xff]
        %v865 = vld [vmem:[#allocation2 + $0x8] sm:$0xff]
        %v866 = vld [vmem:[#allocation2 + $0x10] sm:$0xff]
        %v867 = vld [vmem:[#allocation2 + $0x18] sm:$0xff]
        %v868 = vld [vmem:[#allocation11] sm:$0xff]
        %v869 = vld [vmem:[#allocation11 + $0x8] sm:$0xff]
        %v870 = vld [vmem:[#allocation11 + $0x10] sm:$0xff]
        %v871 = vld [vmem:[#allocation11 + $0x18] sm:$0xff]
        %v872 = vld [vmem:[#allocation11 + $0x20] sm:$0xff]
        %v873 = vld [vmem:[#allocation11 + $0x28] sm:$0xff]
        %v874 = vld [vmem:[#allocation11 + $0x30] sm:$0xff]
        %v875 = vld [vmem:[#allocation11 + $0x38] sm:$0xff]
        %v876 = vld [vmem:[#allocation11 + $0x40] sm:$0xff]
        %v877 = vld [vmem:[#allocation11 + $0x48] sm:$0xff]
        %v878 = vld [vmem:[#allocation11 + $0x50] sm:$0xff]
        %v879 = vld [vmem:[#allocation11 + $0x58] sm:$0xff]
        %v880 = vld [vmem:[#allocation11 + $0x60] sm:$0xff]
        %v881 = vld [vmem:[#allocation11 + $0x68] sm:$0xff]
        %v882 = vld [vmem:[#allocation11 + $0x70] sm:$0xff]
        %v883 = vld [vmem:[#allocation11 + $0x78] sm:$0xff]
        %v884 = vld [vmem:[%s6] sm:$0x1]
        %v886 = vlaneseq
        %v887 = vshrl.u32 %v886, 7
        %v888 = vsub.s32 0, %v887
        %v889 = vrot.slane %v884, %v888
        %891 = vmatprep.subr.mxu0 0.0
        %892 = vmatpush1.msra.mxu0 %v868
        %893 = vmatprep.subr.mxu0 0.0
        %894 = vmatpush1.msra.mxu0 %v869
        %895 = vmatprep.subr.mxu0 0.0
        %896 = vmatpush1.msra.mxu0 %v870
        %897 = vmatprep.subr.mxu0 0.0
        %898 = vmatpush1.msra.mxu0 %v871
        %899 = vmatprep.subr.mxu0 0.0
        %900 = vmatpush1.msra.mxu0 %v872
        %901 = vmatprep.subr.mxu0 0.0
        %902 = vmatpush1.msra.mxu0 %v873
        %903 = vmatprep.subr.mxu0 0.0
        %904 = vmatpush1.msra.mxu0 %v874
        %905 = vmatprep.subr.mxu0 0.0
        %906 = vmatpush1.msra.mxu0 %v875
        %907 = vmatprep.subr.mxu0 0.0
        %908 = vmatpush1.msra.mxu0 %v876
        %909 = vmatprep.subr.mxu0 0.0
        %910 = vmatpush1.msra.mxu0 %v877
        %911 = vmatprep.subr.mxu0 0.0
        %912 = vmatpush1.msra.mxu0 %v878
        %913 = vmatprep.subr.mxu0 0.0
        %914 = vmatpush1.msra.mxu0 %v879
        %915 = vmatprep.subr.mxu0 0.0
        %916 = vmatpush1.msra.mxu0 %v880
        %917 = vmatprep.subr.mxu0 0.0
        %918 = vmatpush1.msra.mxu0 %v881
        %919 = vmatprep.subr.mxu0 0.0
        %920 = vmatpush1.msra.mxu0 %v882
        %921 = vmatprep.subr.mxu0 0.0
        %922 = vmatpush1.msra.mxu0 %v883
        %923 = vmatprep.subr.mxu0 0.0
        %924 = vmatpush1.msra.mxu0 0.0
        %925 = vmatprep.subr.mxu0 0.0
        %926 = vmatpush1.msra.mxu0 0.0
        %927 = vmatprep.subr.mxu0 0.0
        %928 = vmatpush1.msra.mxu0 0.0
        %929 = vmatprep.subr.mxu0 0.0
        %930 = vmatpush1.msra.mxu0 0.0
        %931 = vmatprep.subr.mxu0 0.0
        %932 = vmatpush1.msra.mxu0 0.0
        %933 = vmatprep.subr.mxu0 0.0
        %934 = vmatpush1.msra.mxu0 0.0
        %935 = vmatprep.subr.mxu0 0.0
        %936 = vmatpush1.msra.mxu0 0.0
        %937 = vmatprep.subr.mxu0 0.0
        %938 = vmatpush1.msra.mxu0 0.0
        %939 = vmatprep.subr.mxu0 0.0
        %940 = vmatpush1.msra.mxu0 0.0
        %941 = vmatprep.subr.mxu0 0.0
        %942 = vmatpush1.msra.mxu0 0.0
        %943 = vmatprep.subr.mxu0 0.0
        %944 = vmatpush1.msra.mxu0 0.0
        %945 = vmatprep.subr.mxu0 0.0
        %946 = vmatpush1.msra.mxu0 0.0
        %947 = vmatprep.subr.mxu0 0.0
        %948 = vmatpush1.msra.mxu0 0.0
        %949 = vmatprep.subr.mxu0 0.0
        %950 = vmatpush1.msra.mxu0 0.0
        %951 = vmatprep.subr.mxu0 0.0
        %952 = vmatpush1.msra.mxu0 0.0
        %953 = vmatprep.subr.mxu0 0.0
        %954 = vmatpush1.msra.mxu0 0.0
        %955 = vmatprep.mubr.f32.mxu0 0.0
        %956 = vmatmul.mubr.f32.gmra.mrb[0].mxu0 %v864
        %v957 = vpop.f32.mrb[0].mxu0
        %v958 = vadd.f32 %v889, %v957
        %v959 = vpop.f32.mrb[0].mxu0
        %960 = vmatprep.mubr.f32.mxu0 0.0
        %961 = vmatmul.mubr.f32.gmra.mrb[0].mxu0 %v865
        %v962 = vpop.f32.mrb[0].mxu0
        %v963 = vadd.f32 %v889, %v962
        %v964 = vpop.f32.mrb[0].mxu0
        %965 = vmatprep.mubr.f32.mxu0 0.0
        %966 = vmatmul.mubr.f32.gmra.mrb[0].mxu0 %v866
        %v967 = vpop.f32.mrb[0].mxu0
        %v968 = vadd.f32 %v889, %v967
        %v969 = vpop.f32.mrb[0].mxu0
        %970 = vmatprep.mubr.f32.mxu0 0.0
        %971 = vmatmul.mubr.f32.gmra.mrb[0].mxu0 %v867
        %v972 = vpop.f32.mrb[0].mxu0
        %v973 = vadd.f32 %v889, %v972
        %v974 = vpop.f32.mrb[0].mxu0
        %975 = vdwg.mxu0
        %976 = vst [vmem:[%s376] sm:$0xff] %v958
        %977 = vst [vmem:[%s376 + $0x8] sm:$0xff] %v963
        %978 = vst [vmem:[%s376 + $0x10] sm:$0xff] %v968
        %979 = vst [vmem:[%s376 + $0x18] sm:$0xff] %v973
        %s980 = sand.u32 %s189, 1
        %s981 = scalar_lea.sflag [#allocation5], %s980
        %s982 = sand.u32 %s189, 1
        %s983 = smul.addr %s982, 32
        %s984 = scalar_lea.vmem [#allocation12], %s983
        // Predicated region
        $region73: #{tpu_custom_call.1} parent=47 // pred_check
          %p985 = pneg %p199
        $region74: #{tpu_custom_call.1} parent=47 // pred_check_branch
          %987 = sbr.rel (%p985) target = $region76
        $region75: #{tpu_custom_call.1} parent=47 // pred_region
          %s988 = smul.u32 4, %s29
          %s990 = ssub.s32 512, 512
          %991 = vsyncadd %s981, %s990
          %s992 = smul.addr %s988, 128
          %s993 = scalar_lea.hbm %s7, %s992
          %s994 = sshll.u32 %s984, 4
          %s995 = int_to_ptr.vmem [resolvable:$true] %s994
          %1000 = dma.vmem_to_hbm [thread:$0]  %s995, 512, %s993, %s981, 128, 128, 8
        $region76: #{tpu_custom_call.1} parent=47 // pred_fallthru
          _
        // Predicated region
        $region77: #{tpu_custom_call.1} parent=47 // pred_check
          %p1001 = pneg %p220
        $region78: #{tpu_custom_call.1} parent=47 // pred_check_branch
          %1003 = sbr.rel (%p1001) target = $region80
        $region79: #{tpu_custom_call.1} parent=47 // pred_region
          %s1005 = ssub.s32 128, 128
          %1006 = vsyncadd [#allocation14], %s1005
          %s1008 = sshll.u32 [#allocation13], 4
          %s1009 = int_to_ptr.vmem [resolvable:$true] %s1008
          %1011 = dma.vmem_to_hbm [thread:$0]  %s1009, 128, %s8, [#allocation14]
        $region80: #{tpu_custom_call.1} parent=47 // pred_fallthru
          _
        // Predicated region
        $region81: #{tpu_custom_call.1} parent=47 // pred_check
          %p1012 = pneg %p220
        $region82: #{tpu_custom_call.1} parent=47 // pred_check_branch
          %1014 = sbr.rel (%p1012) target = $region84
        $region83: #{tpu_custom_call.1} parent=47 // pred_region
          %1015 = dma.done [#allocation14], 128
        $region84: #{tpu_custom_call.1} parent=47 // pred_fallthru
          _
      $region48: #{tpu_custom_call.1} parent=5 // pred_fallthru
        _
      %p1016 = scmp.le.s32.totalorder 2, %s24
      // Predicated region
      $region85: #{tpu_custom_call.1} parent=5 // pred_check
        %p1017 = pneg %p1016
      $region86: #{tpu_custom_call.1} parent=5 // pred_check_branch
        %1019 = sbr.rel (%p1017) target = $region88
      $region87: #{tpu_custom_call.1} parent=5 // pred_region
        %s1020 = ssub.s32 %s24, 2
        // Predicated region
        $region89: #{tpu_custom_call.1} parent=87 // pred_check
          %p1021 = pneg %p205
        $region90: #{tpu_custom_call.1} parent=87 // pred_check_branch
          %1023 = sbr.rel (%p1021) target = $region92
        $region91: #{tpu_custom_call.1} parent=87 // pred_region
          %s1024 = sand.u32 %s190, 1
          %s1025 = scalar_lea.sflag [#allocation5], %s1024
          %s1026 = sand.u32 %s190, 1
          %s1027 = smul.addr %s1026, 32
          %s1028 = scalar_lea.vmem [#allocation12], %s1027
          %1029 = dma.done %s1025, 512
        $region92: #{tpu_custom_call.1} parent=87 // pred_fallthru
          _
      $region88: #{tpu_custom_call.1} parent=5 // pred_fallthru
        _
    $region6: #{tpu_custom_call.1} parent=1 // loop_footer
      %s28 = sadd.s32 1, %s24
    $region7: #{tpu_custom_call.1} parent=1 // loop_footer_branch
      %23 = sbr.rel target = $region3
    $region8: #{tpu_custom_call.1} parent=1 // loop_exit
      _
    %1030 = vsyncpa [#allocation4], 1
    %s1031 = scalar_lea.sflag [#allocation4], 1
    %1032 = vsyncpa %s1031, 1
    %1033 = vsyncpa [#allocation7], 1
    %1034 = vsyncpa [#allocation10], 1
    %1035 = vsyncpa [#allocation5], 1
    %s1036 = scalar_lea.sflag [#allocation5], 1
    %1037 = vsyncpa %s1036, 1
    %1038 = vsyncpa [#allocation14], 1

</llo_original>
